<compile_context>
chip_gen: v6e
topology: v6e:2x2x1
jax: 0.10.0
libtpu: 0.0.40
codegen_flags: <defaults>
</compile_context>

<pallas_src>
import functools

import jax
import jax.numpy as jnp
from jax.experimental import pallas as pl
from jax.experimental.pallas import tpu as pltpu


def _mlp_kernel(x_ref, w_ref, b_ref, o_ref, *, num_layers: int):
    """Whole MLP in one kernel body; activations stay in vregs between layers.

    x_ref : (Bp, P)        VMEM  (features zero-padded to P=128)
    w_ref : (L, P, P)      VMEM  (all layer weights, [in, out], zero-padded)
    b_ref : (L, 1, P)      VMEM  (all layer biases, zero-padded)
    o_ref : (Bp, P)        VMEM  (lane-dense padded output)
    """
    h = x_ref[...]
    for i in range(num_layers):                       # static unrolled loop
        w = w_ref[i]                                  # (P, P), static index
        b = b_ref[i]                                  # (1, P)
        # Full 128-wide MXU matmul with f32 accumulation.
        h = jnp.dot(h, w, preferred_element_type=jnp.float32) + b
        if i != num_layers - 1:
            # Exact sigmoid: exp on the EUP, add/div on the VPU, all f32.
            h = 1.0 / (1.0 + jnp.exp(-h))
    o_ref[...] = h.astype(o_ref.dtype)


def pack_params(params, *, lane=128):
    """Pack per-layer (w[in,out], b[out]) into one weight + one bias array.

    All dims are zero-padded to a multiple of 128 so every matmul is a full
    lane-width MXU op.  Done once at init, not per forward call.
    """
    num_layers = len(params)
    dims = [params[0][0].shape[0]] + [w.shape[1] for w, _ in params]
    pdim = ((max(dims) + lane - 1) // lane) * lane
    w_packed = jnp.zeros((num_layers, pdim, pdim), jnp.float32)
    b_packed = jnp.zeros((num_layers, 1, pdim), jnp.float32)
    for i, (w, b) in enumerate(params):
        w_packed = w_packed.at[i, : w.shape[0], : w.shape[1]].set(w)
        b_packed = b_packed.at[i, 0, : b.shape[-1]].set(b.reshape(-1))
    return w_packed, b_packed


def nn_forward(w_packed, b_packed, x, *, output_dim, sublane=8):
    """(Linear -> Sigmoid) * hidden_layers -> Linear, as one fused pallas_call."""
    num_layers, pdim, _ = w_packed.shape
    batch, input_dim = x.shape
    bpad = ((batch + sublane - 1) // sublane) * sublane

    # Zero-pad x into the lane-dense (bpad, pdim) layout the kernel expects.
    x_pad = jnp.zeros((bpad, pdim), jnp.float32).at[:batch, :input_dim].set(x)

    kernel = functools.partial(_mlp_kernel, num_layers=num_layers)
    vmem = pl.BlockSpec(memory_space=pltpu.MemorySpace.VMEM)
    out = pl.pallas_call(
        kernel,
        out_shape=jax.ShapeDtypeStruct((bpad, pdim), jnp.float32),
        in_specs=[vmem, vmem, vmem],
        out_specs=vmem,
    )(x_pad, w_packed, b_packed)
    return out[:batch, :output_dim]
    # TODO(synk): when batch grows, add a "parallel" batch grid axis (sweep
    # 512-2048 row blocks; constant index_map keeps w/b VMEM-resident across
    # grid steps) and budget against v7x's 64 MiB VMEM / 2 TensorCores.


def init_nn_params(key, input_dim, hidden_layers, hidden_dim, output_dim):
    """Init mirroring nn.Linear default U[-1/sqrt(fan_in), 1/sqrt(fan_in)].

    Matches the PyTorch NN: Linear(input,hidden)+Sigmoid, then
    (hidden_layers-1) x [Linear(hidden,hidden)+Sigmoid], then Linear(hidden,output).
    Weights are stored [in, out] (= PyTorch weight.T) so the kernel never transposes.
    """
    dims = [input_dim] + [hidden_dim] * hidden_layers + [output_dim]
    params = []
    for i in range(len(dims) - 1):
        fan_in, fan_out = dims[i], dims[i + 1]
        key, kw, kb = jax.random.split(key, 3)
        bound = 1.0 / jnp.sqrt(jnp.float32(fan_in))
        w = jax.random.uniform(kw, (fan_in, fan_out), jnp.float32, -bound, bound)
        b = jax.random.uniform(kb, (fan_out,), jnp.float32, -bound, bound)
        params.append((w, b))
    return params


def nn_forward_ref(params, x):
    """Pure-JAX reference on the unpacked params (weights already [in, out])."""
    h = x
    n_layers = len(params)
    for idx, (w, b) in enumerate(params):
        h = h @ w + b
        if idx != n_layers - 1:
            h = 1.0 / (1.0 + jnp.exp(-h))   # == nn.Sigmoid
    return h


if __name__ == "__main__":
    # Small, forward-consistent shapes.
    batch = 8
    input_dim = 16
    hidden_layers = 3      # -> 3 Linear+Sigmoid blocks, then the output Linear
    hidden_dim = 32
    output_dim = 4

    key = jax.random.PRNGKey(0)
    key, kx = jax.random.split(key)
    x = jax.random.normal(kx, (batch, input_dim), jnp.float32)

    params = init_nn_params(key, input_dim, hidden_layers, hidden_dim, output_dim)
    w_packed, b_packed = pack_params(params)          # packed once, outside jit

    fwd = jax.jit(functools.partial(nn_forward, output_dim=output_dim))
    out = jax.block_until_ready(fwd(w_packed, b_packed, x))
    ref = jax.block_until_ready(nn_forward_ref(params, x))

    assert out.shape == (batch, output_dim), out.shape
    assert jnp.allclose(out, ref, atol=1e-5, rtol=1e-5), float(
        jnp.max(jnp.abs(out - ref)))

    print("KERNEL_OK")
</pallas_src>

<mosaic_0001>
module attributes {stable_mosaic.version = 11 : i64} {
  func.func @_mlp_kernel(%arg0: memref<8x128xf32, #tpu.memory_space<vmem>>, %arg1: memref<4x128x128xf32, #tpu.memory_space<vmem>>, %arg2: memref<4x1x128xf32, #tpu.memory_space<vmem>>, %arg3: memref<8x128xf32, #tpu.memory_space<vmem>>) attributes {dimension_semantics = [], scalar_prefetch = 0 : i64, scratch_operands = 0 : i64, tpu.core_type = #tpu.core_type<tc>} {
    %c0 = arith.constant 0 : index
    %c0_0 = arith.constant 0 : index
    %0 = vector.load %arg0[%c0, %c0_0] : memref<8x128xf32, #tpu.memory_space<vmem>>, vector<8x128xf32>
    %c0_1 = arith.constant 0 : index
    %c0_2 = arith.constant 0 : index
    %c0_3 = arith.constant 0 : index
    %1 = vector.load %arg1[%c0_1, %c0_2, %c0_3] : memref<4x128x128xf32, #tpu.memory_space<vmem>>, vector<1x128x128xf32>
    %2 = vector.shape_cast %1 : vector<1x128x128xf32> to vector<128x128xf32>
    %c0_4 = arith.constant 0 : index
    %c0_5 = arith.constant 0 : index
    %c0_6 = arith.constant 0 : index
    %3 = vector.load %arg2[%c0_4, %c0_5, %c0_6] : memref<4x1x128xf32, #tpu.memory_space<vmem>>, vector<1x1x128xf32>
    %4 = vector.shape_cast %3 : vector<1x1x128xf32> to vector<1x128xf32>
    %cst = arith.constant dense<0.000000e+00> : vector<8x128xf32>
    %5 = tpu.matmul %0, %2, %cst {dimension_numbers = #tpu.dot_dimension_numbers<[1], [0], [0], [1], [0, 0, 1, 1], [], []>} : vector<8x128xf32>, vector<128x128xf32>, vector<8x128xf32> -> vector<8x128xf32>
    %6 = vector.broadcast %4 : vector<1x128xf32> to vector<8x128xf32>
    %7 = arith.addf %5, %6 : vector<8x128xf32>
    %cst_7 = arith.constant 0.000000e+00 : f32
    %8 = vector.broadcast %cst_7 : f32 to vector<8x128xf32>
    %9 = arith.subf %8, %7 : vector<8x128xf32>
    %10 = math.exp %9 : vector<8x128xf32>
    %cst_8 = arith.constant 1.000000e+00 : f32
    %11 = vector.broadcast %cst_8 : f32 to vector<8x128xf32>
    %12 = arith.addf %11, %10 : vector<8x128xf32>
    %cst_9 = arith.constant 1.000000e+00 : f32
    %13 = vector.broadcast %cst_9 : f32 to vector<8x128xf32>
    %14 = arith.divf %13, %12 : vector<8x128xf32>
    %c1 = arith.constant 1 : index
    %c0_10 = arith.constant 0 : index
    %c0_11 = arith.constant 0 : index
    %15 = vector.load %arg1[%c1, %c0_10, %c0_11] : memref<4x128x128xf32, #tpu.memory_space<vmem>>, vector<1x128x128xf32>
    %16 = vector.shape_cast %15 : vector<1x128x128xf32> to vector<128x128xf32>
    %c1_12 = arith.constant 1 : index
    %c0_13 = arith.constant 0 : index
    %c0_14 = arith.constant 0 : index
    %17 = vector.load %arg2[%c1_12, %c0_13, %c0_14] : memref<4x1x128xf32, #tpu.memory_space<vmem>>, vector<1x1x128xf32>
    %18 = vector.shape_cast %17 : vector<1x1x128xf32> to vector<1x128xf32>
    %cst_15 = arith.constant dense<0.000000e+00> : vector<8x128xf32>
    %19 = tpu.matmul %14, %16, %cst_15 {dimension_numbers = #tpu.dot_dimension_numbers<[1], [0], [0], [1], [0, 0, 1, 1], [], []>} : vector<8x128xf32>, vector<128x128xf32>, vector<8x128xf32> -> vector<8x128xf32>
    %20 = vector.broadcast %18 : vector<1x128xf32> to vector<8x128xf32>
    %21 = arith.addf %19, %20 : vector<8x128xf32>
    %cst_16 = arith.constant 0.000000e+00 : f32
    %22 = vector.broadcast %cst_16 : f32 to vector<8x128xf32>
    %23 = arith.subf %22, %21 : vector<8x128xf32>
    %24 = math.exp %23 : vector<8x128xf32>
    %cst_17 = arith.constant 1.000000e+00 : f32
    %25 = vector.broadcast %cst_17 : f32 to vector<8x128xf32>
    %26 = arith.addf %25, %24 : vector<8x128xf32>
    %cst_18 = arith.constant 1.000000e+00 : f32
    %27 = vector.broadcast %cst_18 : f32 to vector<8x128xf32>
    %28 = arith.divf %27, %26 : vector<8x128xf32>
    %c2 = arith.constant 2 : index
    %c0_19 = arith.constant 0 : index
    %c0_20 = arith.constant 0 : index
    %29 = vector.load %arg1[%c2, %c0_19, %c0_20] : memref<4x128x128xf32, #tpu.memory_space<vmem>>, vector<1x128x128xf32>
    %30 = vector.shape_cast %29 : vector<1x128x128xf32> to vector<128x128xf32>
    %c2_21 = arith.constant 2 : index
    %c0_22 = arith.constant 0 : index
    %c0_23 = arith.constant 0 : index
    %31 = vector.load %arg2[%c2_21, %c0_22, %c0_23] : memref<4x1x128xf32, #tpu.memory_space<vmem>>, vector<1x1x128xf32>
    %32 = vector.shape_cast %31 : vector<1x1x128xf32> to vector<1x128xf32>
    %cst_24 = arith.constant dense<0.000000e+00> : vector<8x128xf32>
    %33 = tpu.matmul %28, %30, %cst_24 {dimension_numbers = #tpu.dot_dimension_numbers<[1], [0], [0], [1], [0, 0, 1, 1], [], []>} : vector<8x128xf32>, vector<128x128xf32>, vector<8x128xf32> -> vector<8x128xf32>
    %34 = vector.broadcast %32 : vector<1x128xf32> to vector<8x128xf32>
    %35 = arith.addf %33, %34 : vector<8x128xf32>
    %cst_25 = arith.constant 0.000000e+00 : f32
    %36 = vector.broadcast %cst_25 : f32 to vector<8x128xf32>
    %37 = arith.subf %36, %35 : vector<8x128xf32>
    %38 = math.exp %37 : vector<8x128xf32>
    %cst_26 = arith.constant 1.000000e+00 : f32
    %39 = vector.broadcast %cst_26 : f32 to vector<8x128xf32>
    %40 = arith.addf %39, %38 : vector<8x128xf32>
    %cst_27 = arith.constant 1.000000e+00 : f32
    %41 = vector.broadcast %cst_27 : f32 to vector<8x128xf32>
    %42 = arith.divf %41, %40 : vector<8x128xf32>
    %c3 = arith.constant 3 : index
    %c0_28 = arith.constant 0 : index
    %c0_29 = arith.constant 0 : index
    %43 = vector.load %arg1[%c3, %c0_28, %c0_29] : memref<4x128x128xf32, #tpu.memory_space<vmem>>, vector<1x128x128xf32>
    %44 = vector.shape_cast %43 : vector<1x128x128xf32> to vector<128x128xf32>
    %c3_30 = arith.constant 3 : index
    %c0_31 = arith.constant 0 : index
    %c0_32 = arith.constant 0 : index
    %45 = vector.load %arg2[%c3_30, %c0_31, %c0_32] : memref<4x1x128xf32, #tpu.memory_space<vmem>>, vector<1x1x128xf32>
    %46 = vector.shape_cast %45 : vector<1x1x128xf32> to vector<1x128xf32>
    %cst_33 = arith.constant dense<0.000000e+00> : vector<8x128xf32>
    %47 = tpu.matmul %42, %44, %cst_33 {dimension_numbers = #tpu.dot_dimension_numbers<[1], [0], [0], [1], [0, 0, 1, 1], [], []>} : vector<8x128xf32>, vector<128x128xf32>, vector<8x128xf32> -> vector<8x128xf32>
    %48 = vector.broadcast %46 : vector<1x128xf32> to vector<8x128xf32>
    %49 = arith.addf %47, %48 : vector<8x128xf32>
    %c0_34 = arith.constant 0 : index
    %c0_35 = arith.constant 0 : index
    %50 = vector.load %arg3[%c0_34, %c0_35] : memref<8x128xf32, #tpu.memory_space<vmem>>, vector<8x128xf32>
    tpu.vector_store %arg3[%c0_34, %c0_35], %49 {strides = array<i32>} : memref<8x128xf32, #tpu.memory_space<vmem>>, vector<8x128xf32>,
    return
  }
}

</mosaic_0001>

<llo_original>
// kernel: nn_forward.1
$region0: #{nn_forward.1}
  #allocation0 [shape = 'u32[]', space=smem, size = 0x4, offset = 0x4, fixed_abs, tag = 'smem constant byte address 0x4 - core index']
  #allocation1 [shape = 'u32[144,128]{1,0:T(1,128)}', space=vmem, size = 0x12000, scoped, tag = 'internal scratch']
  %s0 = inlined_call_operand.vmem [shape: f32[8,128], index: 0, kind: input, shape index: {}]
  %s1 = inlined_call_operand.hbm [shape: f32[4,128,128], index: 1, kind: input, shape index: {}]
  %s2 = inlined_call_operand.vmem [shape: f32[4,1,128], index: 2, kind: input, shape index: {}]
  %s3 = inlined_call_operand.vmem [shape: f32[8,128], index: 3, kind: output, shape index: {}]
  %s4 = sld [smem:[#allocation0]]
  $region26: #{nn_forward.1} parent=0
    _
  %s6 = ssub.s32 1, %s4
  %s7 = scalar_select 0, %s6, %s4
  $region1: #{nn_forward.1} parent=0
    #allocation2 [shape = 'u8[262144]{0}', space=vmem, size = 0x40000, scoped, tag = 'input window, operand 1, single buffered']
    #allocation3 [shape = 's32[1]{0}', space=sflag, size = 0x4, scoped, tag = 'scoped memory for nn_forward.1']
    %8 = vsyncpa [#allocation3], 0
    // Predicated region
    $region2: #{nn_forward.1} parent=1 // pred_check
      _
    $region3: #{nn_forward.1} parent=1 // pred_check_branch
      %10 = sbr.rel (0) target = $region5
    $region4: #{nn_forward.1} parent=1 // pred_region
      _
    $region5: #{nn_forward.1} parent=1 // pred_fallthru
      _
    // Predicated region
    $region6: #{nn_forward.1} parent=1 // pred_check
      _
    $region7: #{nn_forward.1} parent=1 // pred_check_branch
      %12 = sbr.rel (0) target = $region9
    $region8: #{nn_forward.1} parent=1 // pred_region
      %s14 = ssub.s32 8192, 8192
      %15 = vsyncadd [#allocation3], %s14
      %s16 = sshll.u32 [#allocation2], 4
      %s17 = int_to_ptr.vmem [resolvable:$true] %s16
      %22 = dma.hbm_to_vmem [thread:$0]  %s1, 8192, %s17, [#allocation3], 128, 128, 8
    $region9: #{nn_forward.1} parent=1 // pred_fallthru
      _
    // Predicated region
    $region10: #{nn_forward.1} parent=1 // pred_check
      _
    $region11: #{nn_forward.1} parent=1 // pred_check_branch
      %24 = sbr.rel (0) target = $region13
    $region12: #{nn_forward.1} parent=1 // pred_region
      _
    $region13: #{nn_forward.1} parent=1 // pred_fallthru
      _
    // Predicated region
    $region14: #{nn_forward.1} parent=1 // pred_check
      _
    $region15: #{nn_forward.1} parent=1 // pred_check_branch
      %26 = sbr.rel (0) target = $region17
    $region16: #{nn_forward.1} parent=1 // pred_region
      %27 = dma.done [#allocation3], 8192
    $region17: #{nn_forward.1} parent=1 // pred_fallthru
      _
    %v28 = vld [vmem:[%s0] sm:$0xff]
    %v29 = vld [vmem:[#allocation2] sm:$0xff]
    %v30 = vld [vmem:[#allocation2 + $0x8] sm:$0xff]
    %v31 = vld [vmem:[#allocation2 + $0x10] sm:$0xff]
    %v32 = vld [vmem:[#allocation2 + $0x18] sm:$0xff]
    %v33 = vld [vmem:[#allocation2 + $0x20] sm:$0xff]
    %v34 = vld [vmem:[#allocation2 + $0x28] sm:$0xff]
    %v35 = vld [vmem:[#allocation2 + $0x30] sm:$0xff]
    %v36 = vld [vmem:[#allocation2 + $0x38] sm:$0xff]
    %v37 = vld [vmem:[#allocation2 + $0x40] sm:$0xff]
    %v38 = vld [vmem:[#allocation2 + $0x48] sm:$0xff]
    %v39 = vld [vmem:[#allocation2 + $0x50] sm:$0xff]
    %v40 = vld [vmem:[#allocation2 + $0x58] sm:$0xff]
    %v41 = vld [vmem:[#allocation2 + $0x60] sm:$0xff]
    %v42 = vld [vmem:[#allocation2 + $0x68] sm:$0xff]
    %v43 = vld [vmem:[#allocation2 + $0x70] sm:$0xff]
    %v44 = vld [vmem:[#allocation2 + $0x78] sm:$0xff]
    %v45 = vld [vmem:[%s2] sm:$0x1]
    %v47 = vlaneseq
    %v48 = vshrl.u32 %v47, 7
    %v49 = vsub.s32 0, %v48
    %v50 = vrot.slane %v45, %v49
    %52 = vmatprep.subr.mxu0 0.0
    %53 = vmatpush1.msra.mxu0 %v44
    %54 = vmatprep.subr.mxu0 0.0
    %55 = vmatpush1.msra.mxu0 %v43
    %56 = vmatprep.subr.mxu0 0.0
    %57 = vmatpush1.msra.mxu0 %v42
    %58 = vmatprep.subr.mxu0 0.0
    %59 = vmatpush1.msra.mxu0 %v41
    %60 = vmatprep.subr.mxu0 0.0
    %61 = vmatpush1.msra.mxu0 %v40
    %62 = vmatprep.subr.mxu0 0.0
    %63 = vmatpush1.msra.mxu0 %v39
    %64 = vmatprep.subr.mxu0 0.0
    %65 = vmatpush1.msra.mxu0 %v38
    %66 = vmatprep.subr.mxu0 0.0
    %67 = vmatpush1.msra.mxu0 %v37
    %68 = vmatprep.subr.mxu0 0.0
    %69 = vmatpush1.msra.mxu0 %v36
    %70 = vmatprep.subr.mxu0 0.0
    %71 = vmatpush1.msra.mxu0 %v35
    %72 = vmatprep.subr.mxu0 0.0
    %73 = vmatpush1.msra.mxu0 %v34
    %74 = vmatprep.subr.mxu0 0.0
    %75 = vmatpush1.msra.mxu0 %v33
    %76 = vmatprep.subr.mxu0 0.0
    %77 = vmatpush1.msra.mxu0 %v32
    %78 = vmatprep.subr.mxu0 0.0
    %79 = vmatpush1.msra.mxu0 %v31
    %80 = vmatprep.subr.mxu0 0.0
    %81 = vmatpush1.msra.mxu0 %v30
    %82 = vmatprep.subr.mxu0 0.0
    %83 = vmatpush1.msra.mxu0 %v29
    %84 = vmatprep.subr.mxu0 0.0
    %85 = vmatpush2.msra.mxu0 0.0
    %86 = vmatprep.subr.mxu0 0.0
    %87 = vmatpush2.msra.mxu0 0.0
    %88 = vmatprep.subr.mxu0 0.0
    %89 = vmatpush2.msra.mxu0 0.0
    %90 = vmatprep.subr.mxu0 0.0
    %91 = vmatpush2.msra.mxu0 0.0
    %92 = vmatprep.subr.mxu0 0.0
    %93 = vmatpush2.msra.mxu0 0.0
    %94 = vmatprep.subr.mxu0 0.0
    %95 = vmatpush2.msra.mxu0 0.0
    %96 = vmatprep.subr.mxu0 0.0
    %97 = vmatpush2.msra.mxu0 0.0
    %98 = vmatprep.subr.mxu0 0.0
    %99 = vmatpush2.msra.mxu0 0.0
    %100 = vmatprep.subr.mxu0 0.0
    %101 = vmatpush2.msra.mxu0 0.0
    %102 = vmatprep.subr.mxu0 0.0
    %103 = vmatpush2.msra.mxu0 0.0
    %104 = vmatprep.subr.mxu0 0.0
    %105 = vmatpush2.msra.mxu0 0.0
    %106 = vmatprep.subr.mxu0 0.0
    %107 = vmatpush2.msra.mxu0 0.0
    %108 = vmatprep.subr.mxu0 0.0
    %109 = vmatpush2.msra.mxu0 0.0
    %110 = vmatprep.subr.mxu0 0.0
    %111 = vmatpush2.msra.mxu0 0.0
    %112 = vmatprep.subr.mxu0 0.0
    %113 = vmatpush2.msra.mxu0 0.0
    %114 = vmatprep.subr.mxu0 0.0
    %115 = vmatpush2.msra.mxu0 0.0
    %116 = vmatprep.mubr.f32.mxu0 0.0
    %117 = vmatmul.mubr.f32.gmra.mxu0 %v28
    %v118 = vpop.f32.mrf.mxu0
    %v119 = vadd.f32 %v50, %v118
    %v120 = vpop.f32.mrf.mxu0
    %121 = vdwg.mxu0
    %v122 = vsub.f32 0.0, %v119
    %v123 = vmul.f32 %v122, 1.442695
    %v124 = vpow.pop %v123
    %v125 = vadd.f32 %v124, 1.0
    %v126 = vrcp.pop %v125
    %v127 = vmul.f32 1.0, %v126
    %s128 = scalar_lea.vmem [#allocation2], 128
    %v129 = vld [vmem:[%s128] sm:$0xff]
    %v130 = vld [vmem:[%s128 + $0x8] sm:$0xff]
    %v131 = vld [vmem:[%s128 + $0x10] sm:$0xff]
    %v132 = vld [vmem:[%s128 + $0x18] sm:$0xff]
    %v133 = vld [vmem:[%s128 + $0x20] sm:$0xff]
    %v134 = vld [vmem:[%s128 + $0x28] sm:$0xff]
    %v135 = vld [vmem:[%s128 + $0x30] sm:$0xff]
    %v136 = vld [vmem:[%s128 + $0x38] sm:$0xff]
    %v137 = vld [vmem:[%s128 + $0x40] sm:$0xff]
    %v138 = vld [vmem:[%s128 + $0x48] sm:$0xff]
    %v139 = vld [vmem:[%s128 + $0x50] sm:$0xff]
    %v140 = vld [vmem:[%s128 + $0x58] sm:$0xff]
    %v141 = vld [vmem:[%s128 + $0x60] sm:$0xff]
    %v142 = vld [vmem:[%s128 + $0x68] sm:$0xff]
    %v143 = vld [vmem:[%s128 + $0x70] sm:$0xff]
    %v144 = vld [vmem:[%s128 + $0x78] sm:$0xff]
    %s145 = scalar_lea.vmem %s2, 1
    %v146 = vld [vmem:[%s145] sm:$0x1]
    %v148 = vlaneseq
    %v149 = vshrl.u32 %v148, 7
    %v150 = vsub.s32 0, %v149
    %v151 = vrot.slane %v146, %v150
    %153 = vmatprep.subr.mxu0 0.0
    %154 = vmatpush1.msra.mxu0 %v144
    %155 = vmatprep.subr.mxu0 0.0
    %156 = vmatpush1.msra.mxu0 %v143
    %157 = vmatprep.subr.mxu0 0.0
    %158 = vmatpush1.msra.mxu0 %v142
    %159 = vmatprep.subr.mxu0 0.0
    %160 = vmatpush1.msra.mxu0 %v141
    %161 = vmatprep.subr.mxu0 0.0
    %162 = vmatpush1.msra.mxu0 %v140
    %163 = vmatprep.subr.mxu0 0.0
    %164 = vmatpush1.msra.mxu0 %v139
    %165 = vmatprep.subr.mxu0 0.0
    %166 = vmatpush1.msra.mxu0 %v138
    %167 = vmatprep.subr.mxu0 0.0
    %168 = vmatpush1.msra.mxu0 %v137
    %169 = vmatprep.subr.mxu0 0.0
    %170 = vmatpush1.msra.mxu0 %v136
    %171 = vmatprep.subr.mxu0 0.0
    %172 = vmatpush1.msra.mxu0 %v135
    %173 = vmatprep.subr.mxu0 0.0
    %174 = vmatpush1.msra.mxu0 %v134
    %175 = vmatprep.subr.mxu0 0.0
    %176 = vmatpush1.msra.mxu0 %v133
    %177 = vmatprep.subr.mxu0 0.0
    %178 = vmatpush1.msra.mxu0 %v132
    %179 = vmatprep.subr.mxu0 0.0
    %180 = vmatpush1.msra.mxu0 %v131
    %181 = vmatprep.subr.mxu0 0.0
    %182 = vmatpush1.msra.mxu0 %v130
    %183 = vmatprep.subr.mxu0 0.0
    %184 = vmatpush1.msra.mxu0 %v129
    %185 = vmatprep.subr.mxu0 0.0
    %186 = vmatpush2.msra.mxu0 0.0
    %187 = vmatprep.subr.mxu0 0.0
    %188 = vmatpush2.msra.mxu0 0.0
    %189 = vmatprep.subr.mxu0 0.0
    %190 = vmatpush2.msra.mxu0 0.0
    %191 = vmatprep.subr.mxu0 0.0
    %192 = vmatpush2.msra.mxu0 0.0
    %193 = vmatprep.subr.mxu0 0.0
    %194 = vmatpush2.msra.mxu0 0.0
    %195 = vmatprep.subr.mxu0 0.0
    %196 = vmatpush2.msra.mxu0 0.0
    %197 = vmatprep.subr.mxu0 0.0
    %198 = vmatpush2.msra.mxu0 0.0
    %199 = vmatprep.subr.mxu0 0.0
    %200 = vmatpush2.msra.mxu0 0.0
    %201 = vmatprep.subr.mxu0 0.0
    %202 = vmatpush2.msra.mxu0 0.0
    %203 = vmatprep.subr.mxu0 0.0
    %204 = vmatpush2.msra.mxu0 0.0
    %205 = vmatprep.subr.mxu0 0.0
    %206 = vmatpush2.msra.mxu0 0.0
    %207 = vmatprep.subr.mxu0 0.0
    %208 = vmatpush2.msra.mxu0 0.0
    %209 = vmatprep.subr.mxu0 0.0
    %210 = vmatpush2.msra.mxu0 0.0
    %211 = vmatprep.subr.mxu0 0.0
    %212 = vmatpush2.msra.mxu0 0.0
    %213 = vmatprep.subr.mxu0 0.0
    %214 = vmatpush2.msra.mxu0 0.0
    %215 = vmatprep.subr.mxu0 0.0
    %216 = vmatpush2.msra.mxu0 0.0
    %217 = vmatprep.mubr.f32.mxu0 0.0
    %218 = vmatmul.mubr.f32.gmra.mxu0 %v127
    %v219 = vpop.f32.mrf.mxu0
    %v220 = vadd.f32 %v151, %v219
    %v221 = vpop.f32.mrf.mxu0
    %222 = vdwg.mxu0
    %v223 = vsub.f32 0.0, %v220
    %v224 = vmul.f32 %v223, 1.442695
    %v225 = vpow.pop %v224
    %v226 = vadd.f32 %v225, 1.0
    %v227 = vrcp.pop %v226
    %v228 = vmul.f32 1.0, %v227
    %s229 = scalar_lea.vmem [#allocation2], 256
    %v230 = vld [vmem:[%s229] sm:$0xff]
    %v231 = vld [vmem:[%s229 + $0x8] sm:$0xff]
    %v232 = vld [vmem:[%s229 + $0x10] sm:$0xff]
    %v233 = vld [vmem:[%s229 + $0x18] sm:$0xff]
    %v234 = vld [vmem:[%s229 + $0x20] sm:$0xff]
    %v235 = vld [vmem:[%s229 + $0x28] sm:$0xff]
    %v236 = vld [vmem:[%s229 + $0x30] sm:$0xff]
    %v237 = vld [vmem:[%s229 + $0x38] sm:$0xff]
    %v238 = vld [vmem:[%s229 + $0x40] sm:$0xff]
    %v239 = vld [vmem:[%s229 + $0x48] sm:$0xff]
    %v240 = vld [vmem:[%s229 + $0x50] sm:$0xff]
    %v241 = vld [vmem:[%s229 + $0x58] sm:$0xff]
    %v242 = vld [vmem:[%s229 + $0x60] sm:$0xff]
    %v243 = vld [vmem:[%s229 + $0x68] sm:$0xff]
    %v244 = vld [vmem:[%s229 + $0x70] sm:$0xff]
    %v245 = vld [vmem:[%s229 + $0x78] sm:$0xff]
    %s246 = scalar_lea.vmem %s2, 2
    %v247 = vld [vmem:[%s246] sm:$0x1]
    %v249 = vlaneseq
    %v250 = vshrl.u32 %v249, 7
    %v251 = vsub.s32 0, %v250
    %v252 = vrot.slane %v247, %v251
    %254 = vmatprep.subr.mxu0 0.0
    %255 = vmatpush1.msra.mxu0 %v245
    %256 = vmatprep.subr.mxu0 0.0
    %257 = vmatpush1.msra.mxu0 %v244
    %258 = vmatprep.subr.mxu0 0.0
    %259 = vmatpush1.msra.mxu0 %v243
    %260 = vmatprep.subr.mxu0 0.0
    %261 = vmatpush1.msra.mxu0 %v242
    %262 = vmatprep.subr.mxu0 0.0
    %263 = vmatpush1.msra.mxu0 %v241
    %264 = vmatprep.subr.mxu0 0.0
    %265 = vmatpush1.msra.mxu0 %v240
    %266 = vmatprep.subr.mxu0 0.0
    %267 = vmatpush1.msra.mxu0 %v239
    %268 = vmatprep.subr.mxu0 0.0
    %269 = vmatpush1.msra.mxu0 %v238
    %270 = vmatprep.subr.mxu0 0.0
    %271 = vmatpush1.msra.mxu0 %v237
    %272 = vmatprep.subr.mxu0 0.0
    %273 = vmatpush1.msra.mxu0 %v236
    %274 = vmatprep.subr.mxu0 0.0
    %275 = vmatpush1.msra.mxu0 %v235
    %276 = vmatprep.subr.mxu0 0.0
    %277 = vmatpush1.msra.mxu0 %v234
    %278 = vmatprep.subr.mxu0 0.0
    %279 = vmatpush1.msra.mxu0 %v233
    %280 = vmatprep.subr.mxu0 0.0
    %281 = vmatpush1.msra.mxu0 %v232
    %282 = vmatprep.subr.mxu0 0.0
    %283 = vmatpush1.msra.mxu0 %v231
    %284 = vmatprep.subr.mxu0 0.0
    %285 = vmatpush1.msra.mxu0 %v230
    %286 = vmatprep.subr.mxu0 0.0
    %287 = vmatpush2.msra.mxu0 0.0
    %288 = vmatprep.subr.mxu0 0.0
    %289 = vmatpush2.msra.mxu0 0.0
    %290 = vmatprep.subr.mxu0 0.0
    %291 = vmatpush2.msra.mxu0 0.0
    %292 = vmatprep.subr.mxu0 0.0
    %293 = vmatpush2.msra.mxu0 0.0
    %294 = vmatprep.subr.mxu0 0.0
    %295 = vmatpush2.msra.mxu0 0.0
    %296 = vmatprep.subr.mxu0 0.0
    %297 = vmatpush2.msra.mxu0 0.0
    %298 = vmatprep.subr.mxu0 0.0
    %299 = vmatpush2.msra.mxu0 0.0
    %300 = vmatprep.subr.mxu0 0.0
    %301 = vmatpush2.msra.mxu0 0.0
    %302 = vmatprep.subr.mxu0 0.0
    %303 = vmatpush2.msra.mxu0 0.0
    %304 = vmatprep.subr.mxu0 0.0
    %305 = vmatpush2.msra.mxu0 0.0
    %306 = vmatprep.subr.mxu0 0.0
    %307 = vmatpush2.msra.mxu0 0.0
    %308 = vmatprep.subr.mxu0 0.0
    %309 = vmatpush2.msra.mxu0 0.0
    %310 = vmatprep.subr.mxu0 0.0
    %311 = vmatpush2.msra.mxu0 0.0
    %312 = vmatprep.subr.mxu0 0.0
    %313 = vmatpush2.msra.mxu0 0.0
    %314 = vmatprep.subr.mxu0 0.0
    %315 = vmatpush2.msra.mxu0 0.0
    %316 = vmatprep.subr.mxu0 0.0
    %317 = vmatpush2.msra.mxu0 0.0
    %318 = vmatprep.mubr.f32.mxu0 0.0
    %319 = vmatmul.mubr.f32.gmra.mxu0 %v228
    %v320 = vpop.f32.mrf.mxu0
    %v321 = vadd.f32 %v252, %v320
    %v322 = vpop.f32.mrf.mxu0
    %323 = vdwg.mxu0
    %v324 = vsub.f32 0.0, %v321
    %v325 = vmul.f32 %v324, 1.442695
    %v326 = vpow.pop %v325
    %v327 = vadd.f32 %v326, 1.0
    %v328 = vrcp.pop %v327
    %v329 = vmul.f32 1.0, %v328
    %s330 = scalar_lea.vmem [#allocation2], 384
    %v331 = vld [vmem:[%s330] sm:$0xff]
    %v332 = vld [vmem:[%s330 + $0x8] sm:$0xff]
    %v333 = vld [vmem:[%s330 + $0x10] sm:$0xff]
    %v334 = vld [vmem:[%s330 + $0x18] sm:$0xff]
    %v335 = vld [vmem:[%s330 + $0x20] sm:$0xff]
    %v336 = vld [vmem:[%s330 + $0x28] sm:$0xff]
    %v337 = vld [vmem:[%s330 + $0x30] sm:$0xff]
    %v338 = vld [vmem:[%s330 + $0x38] sm:$0xff]
    %v339 = vld [vmem:[%s330 + $0x40] sm:$0xff]
    %v340 = vld [vmem:[%s330 + $0x48] sm:$0xff]
    %v341 = vld [vmem:[%s330 + $0x50] sm:$0xff]
    %v342 = vld [vmem:[%s330 + $0x58] sm:$0xff]
    %v343 = vld [vmem:[%s330 + $0x60] sm:$0xff]
    %v344 = vld [vmem:[%s330 + $0x68] sm:$0xff]
    %v345 = vld [vmem:[%s330 + $0x70] sm:$0xff]
    %v346 = vld [vmem:[%s330 + $0x78] sm:$0xff]
    %s347 = scalar_lea.vmem %s2, 3
    %v348 = vld [vmem:[%s347] sm:$0x1]
    %v350 = vlaneseq
    %v351 = vshrl.u32 %v350, 7
    %v352 = vsub.s32 0, %v351
    %v353 = vrot.slane %v348, %v352
    %355 = vmatprep.subr.mxu0 0.0
    %356 = vmatpush1.msra.mxu0 %v346
    %357 = vmatprep.subr.mxu0 0.0
    %358 = vmatpush1.msra.mxu0 %v345
    %359 = vmatprep.subr.mxu0 0.0
    %360 = vmatpush1.msra.mxu0 %v344
    %361 = vmatprep.subr.mxu0 0.0
    %362 = vmatpush1.msra.mxu0 %v343
    %363 = vmatprep.subr.mxu0 0.0
    %364 = vmatpush1.msra.mxu0 %v342
    %365 = vmatprep.subr.mxu0 0.0
    %366 = vmatpush1.msra.mxu0 %v341
    %367 = vmatprep.subr.mxu0 0.0
    %368 = vmatpush1.msra.mxu0 %v340
    %369 = vmatprep.subr.mxu0 0.0
    %370 = vmatpush1.msra.mxu0 %v339
    %371 = vmatprep.subr.mxu0 0.0
    %372 = vmatpush1.msra.mxu0 %v338
    %373 = vmatprep.subr.mxu0 0.0
    %374 = vmatpush1.msra.mxu0 %v337
    %375 = vmatprep.subr.mxu0 0.0
    %376 = vmatpush1.msra.mxu0 %v336
    %377 = vmatprep.subr.mxu0 0.0
    %378 = vmatpush1.msra.mxu0 %v335
    %379 = vmatprep.subr.mxu0 0.0
    %380 = vmatpush1.msra.mxu0 %v334
    %381 = vmatprep.subr.mxu0 0.0
    %382 = vmatpush1.msra.mxu0 %v333
    %383 = vmatprep.subr.mxu0 0.0
    %384 = vmatpush1.msra.mxu0 %v332
    %385 = vmatprep.subr.mxu0 0.0
    %386 = vmatpush1.msra.mxu0 %v331
    %387 = vmatprep.subr.mxu0 0.0
    %388 = vmatpush2.msra.mxu0 0.0
    %389 = vmatprep.subr.mxu0 0.0
    %390 = vmatpush2.msra.mxu0 0.0
    %391 = vmatprep.subr.mxu0 0.0
    %392 = vmatpush2.msra.mxu0 0.0
    %393 = vmatprep.subr.mxu0 0.0
    %394 = vmatpush2.msra.mxu0 0.0
    %395 = vmatprep.subr.mxu0 0.0
    %396 = vmatpush2.msra.mxu0 0.0
    %397 = vmatprep.subr.mxu0 0.0
    %398 = vmatpush2.msra.mxu0 0.0
    %399 = vmatprep.subr.mxu0 0.0
    %400 = vmatpush2.msra.mxu0 0.0
    %401 = vmatprep.subr.mxu0 0.0
    %402 = vmatpush2.msra.mxu0 0.0
    %403 = vmatprep.subr.mxu0 0.0
    %404 = vmatpush2.msra.mxu0 0.0
    %405 = vmatprep.subr.mxu0 0.0
    %406 = vmatpush2.msra.mxu0 0.0
    %407 = vmatprep.subr.mxu0 0.0
    %408 = vmatpush2.msra.mxu0 0.0
    %409 = vmatprep.subr.mxu0 0.0
    %410 = vmatpush2.msra.mxu0 0.0
    %411 = vmatprep.subr.mxu0 0.0
    %412 = vmatpush2.msra.mxu0 0.0
    %413 = vmatprep.subr.mxu0 0.0
    %414 = vmatpush2.msra.mxu0 0.0
    %415 = vmatprep.subr.mxu0 0.0
    %416 = vmatpush2.msra.mxu0 0.0
    %417 = vmatprep.subr.mxu0 0.0
    %418 = vmatpush2.msra.mxu0 0.0
    %419 = vmatprep.mubr.f32.mxu0 0.0
    %420 = vmatmul.mubr.f32.gmra.mxu0 %v329
    %v421 = vpop.f32.mrf.mxu0
    %v422 = vadd.f32 %v353, %v421
    %v423 = vpop.f32.mrf.mxu0
    %424 = vdwg.mxu0
    %425 = vst [vmem:[%s3] sm:$0xff] %v422
    // Predicated region
    $region18: #{nn_forward.1} parent=1 // pred_check
      _
    $region19: #{nn_forward.1} parent=1 // pred_check_branch
      %427 = sbr.rel (0) target = $region21
    $region20: #{nn_forward.1} parent=1 // pred_region
      _
    $region21: #{nn_forward.1} parent=1 // pred_fallthru
      _
    // Predicated region
    $region22: #{nn_forward.1} parent=1 // pred_check
      _
    $region23: #{nn_forward.1} parent=1 // pred_check_branch
      %429 = sbr.rel (0) target = $region25
    $region24: #{nn_forward.1} parent=1 // pred_region
      _
    $region25: #{nn_forward.1} parent=1 // pred_fallthru
      _
    %430 = vsyncpa [#allocation3], 1

</llo_original>
